<compile_context>
chip_gen: v5e
topology: v5e:2x2
jax: 0.10.0
libtpu: 0.0.40
codegen_flags: <defaults>
</compile_context>

<pallas_src>
import functools

import jax
import jax.numpy as jnp
from jax.experimental import pallas as pl
from jax.experimental.pallas import tpu as pltpu


def _rmsnorm_kernel(x_ref, w_ref, o_ref, *, eps: float):
    # x_ref: (tile_rows, hidden), w_ref: (1, hidden) f32, o_ref: (tile_rows, hidden)
    x = x_ref[...].astype(jnp.float32)
    w = w_ref[...]  # already float32 (cast once in the wrapper)

    # rms = sqrt(mean(x^2));  eps is added AFTER the sqrt (matches
    # weight * (x / (rms + eps)) in the PyTorch module).
    ms = jnp.mean(x * x, axis=-1, keepdims=True)
    inv = pl.reciprocal(jnp.sqrt(ms) + eps, approx=False)  # exact: 1e-5 tolerance
    o_ref[...] = ((x * inv) * w).astype(o_ref.dtype)


def _vmem_capacity_bytes() -> int:
    """Physical VMEM per TensorCore; falls back to the smallest (v7x, 64 MiB)."""
    try:
        info = pltpu.get_tpu_info()
        cap = int(getattr(info, "vmem_capacity_bytes", 0))
        if cap > 0:
            return cap
    except Exception:
        pass
    return 64 * 1024 * 1024


def _round_up(x: int, m: int) -> int:
    return ((x + m - 1) // m) * m


def _pick_tile_rows(rows: int, hidden: int, itemsize: int, budget: int) -> int:
    """Largest row tile fitting `budget` bytes, dtype-packing aligned, core-balanced."""
    # Sublane packing multiple: f32 -> 8, bf16 -> 16, int8/fp8 -> 32.
    mult = 8 * max(4 // max(itemsize, 1), 1)

    # Per row: double-buffered input + output tiles at native dtype (4*itemsize)
    # plus ~one persistent f32 intermediate (the elementwise chain mostly fuses).
    bytes_per_row = hidden * (4 * itemsize + 4)
    tr = budget // max(bytes_per_row, 1)
    tr = max((tr // mult) * mult, mult)

    # Never larger than the row count (rounded up to the packing multiple).
    tr = min(tr, _round_up(rows, mult))

    # When there are enough rows, keep >= 4 grid steps so both v7x TensorCores
    # get work AND each core still has >= 2 steps to double-buffer.
    if rows >= 4 * mult:
        cap = max(((rows // 4) // mult) * mult, mult)
        tr = min(tr, cap)
    return tr


def rmsnorm(x: jax.Array, weight: jax.Array, eps: float = 1e-6) -> jax.Array:
    """RMSNorm over the last axis of x. weight has shape (hidden,)."""
    orig_shape = x.shape
    hidden = orig_shape[-1]
    x2d = x.reshape(-1, hidden)
    rows = x2d.shape[0]

    itemsize = jnp.dtype(x.dtype).itemsize
    capacity = _vmem_capacity_bytes()
    budget = capacity // 2              # 64 MiB on v5e/v6e, 32 MiB on v7x
    vmem_limit = (capacity * 3) // 4    # 96 MiB on v5e/v6e, 48 MiB on v7x

    tr = _pick_tile_rows(rows, hidden, itemsize, budget)
    grid = pl.cdiv(rows, tr)  # ragged last block handled by Pallas (no pad/slice)

    # Cast weight to f32 once here so the kernel does not re-cast per grid step.
    w2d = weight.astype(jnp.float32).reshape(1, hidden)

    # TODO(synk): for oddball hidden sizes (not a multiple of 128) output stores
    # become masked vst.msk; real model hidden sizes are fine, so no lane pad here.
    out = pl.pallas_call(
        functools.partial(_rmsnorm_kernel, eps=eps),
        out_shape=jax.ShapeDtypeStruct((rows, hidden), x.dtype),
        grid_spec=pltpu.PrefetchScalarGridSpec(
            num_scalar_prefetch=0,
            grid=(grid,),
            in_specs=[
                pl.BlockSpec((tr, hidden), lambda i: (i, 0)),
                pl.BlockSpec((1, hidden), lambda i: (0, 0)),
            ],
            out_specs=pl.BlockSpec((tr, hidden), lambda i: (i, 0)),
        ),
        compiler_params=pltpu.CompilerParams(
            dimension_semantics=("parallel",),
            vmem_limit_bytes=int(vmem_limit),
        ),
    )(x2d, w2d)

    return out.reshape(orig_shape)


def _reference(x, weight, eps=1e-6):
    rms = jnp.linalg.norm(x, axis=-1, keepdims=True) * x.shape[-1] ** (-0.5)
    return weight * (x / (rms + eps))


if __name__ == "__main__":
    key = jax.random.PRNGKey(0)

    # Primary small shape consistent with the module's forward.
    batch, seq, hidden = 2, 8, 32
    x = jax.random.normal(key, (batch, seq, hidden), dtype=jnp.float32)
    # Deterministic parameter init: matches nn.Parameter(torch.ones(hidden_size)).
    weight = jnp.ones((hidden,), dtype=jnp.float32)

    y = rmsnorm(x, weight, eps=1e-6)
    jax.block_until_ready(y)
    y_ref = _reference(x, weight, eps=1e-6)
    assert y.shape == x.shape
    assert jnp.allclose(y, y_ref, atol=1e-5, rtol=1e-5), "mismatch vs reference"

    # Second check: row count that is NOT a multiple of the tile, exercising the
    # ragged last block (padded reads / dropped OOB writes) without any wrapper pad.
    x2 = jax.random.normal(jax.random.PRNGKey(1), (4, 9, hidden), dtype=jnp.float32)
    y2 = rmsnorm(x2, weight, eps=1e-6)
    jax.block_until_ready(y2)
    y2_ref = _reference(x2, weight, eps=1e-6)
    assert y2.shape == x2.shape
    assert jnp.allclose(y2, y2_ref, atol=1e-5, rtol=1e-5), "ragged-tail mismatch"

    print("KERNEL_OK")
</pallas_src>

<mosaic_0001>
module attributes {stable_mosaic.version = 11 : i64} {
  func.func @_rmsnorm_kernel(%arg0: i32, %arg1: memref<16x32xf32, #tpu.memory_space<vmem>>, %arg2: memref<1x32xf32, #tpu.memory_space<vmem>>, %arg3: memref<16x32xf32, #tpu.memory_space<vmem>>) attributes {dimension_semantics = [#tpu.dimension_semantics<parallel>], iteration_bounds = array<i64: 1>, scalar_prefetch = 0 : i64, scratch_operands = 0 : i64, tpu.core_type = #tpu.core_type<tc>, window_params = [{transform_indices = @transform_0, window_bounds = array<i64: 16, 32>}, {pipeline_mode = #tpu.pipeline_mode<synchronous>, transform_indices = @transform_1, window_bounds = array<i64: 1, 32>}, {transform_indices = @transform_2, window_bounds = array<i64: 16, 32>}]} {
    %c0 = arith.constant 0 : index
    %c0_0 = arith.constant 0 : index
    %0 = vector.load %arg1[%c0, %c0_0] : memref<16x32xf32, #tpu.memory_space<vmem>>, vector<16x32xf32>
    %c0_1 = arith.constant 0 : index
    %c0_2 = arith.constant 0 : index
    %1 = vector.load %arg2[%c0_1, %c0_2] : memref<1x32xf32, #tpu.memory_space<vmem>>, vector<1x32xf32>
    %2 = arith.mulf %0, %0 : vector<16x32xf32>
    %cst = arith.constant dense<0.000000e+00> : vector<16xf32>
    %3 = vector.multi_reduction <add>, %2, %cst [1] : vector<16x32xf32> to vector<16xf32>
    %4 = vector.shape_cast %3 : vector<16xf32> to vector<16x1xf32>
    %cst_3 = arith.constant 3.200000e+01 : f32
    %5 = vector.broadcast %cst_3 : f32 to vector<16x1xf32>
    %6 = arith.divf %4, %5 : vector<16x1xf32>
    %7 = math.sqrt %6 : vector<16x1xf32>
    %cst_4 = arith.constant 9.99999997E-7 : f32
    %8 = vector.broadcast %cst_4 : f32 to vector<16x1xf32>
    %9 = arith.addf %7, %8 : vector<16x1xf32>
    %10 = tpu.reciprocal %9 : vector<16x1xf32> -> vector<16x1xf32>
    %11 = vector.broadcast %10 : vector<16x1xf32> to vector<16x32xf32>
    %12 = arith.mulf %0, %11 : vector<16x32xf32>
    %13 = vector.broadcast %1 : vector<1x32xf32> to vector<16x32xf32>
    %14 = arith.mulf %12, %13 : vector<16x32xf32>
    %c0_5 = arith.constant 0 : index
    %c0_6 = arith.constant 0 : index
    %15 = vector.load %arg3[%c0_5, %c0_6] : memref<16x32xf32, #tpu.memory_space<vmem>>, vector<16x32xf32>
    tpu.vector_store %arg3[%c0_5, %c0_6], %14 {strides = array<i32>} : memref<16x32xf32, #tpu.memory_space<vmem>>, vector<16x32xf32>,
    return
  }
  func.func @transform_0(%arg0: i32) -> (i32, i32) {
    %c0_i32 = arith.constant 0 : i32
    %c0_i32_0 = arith.constant 0 : i32
    return %arg0, %c0_i32 : i32, i32
  }
  func.func @transform_1(%arg0: i32) -> (i32, i32) {
    %c0_i32 = arith.constant 0 : i32
    %c0_i32_0 = arith.constant 0 : i32
    %c0_i32_1 = arith.constant 0 : i32
    return %c0_i32, %c0_i32_0 : i32, i32
  }
  func.func @transform_2(%arg0: i32) -> (i32, i32) {
    %c0_i32 = arith.constant 0 : i32
    %c0_i32_0 = arith.constant 0 : i32
    return %arg0, %c0_i32 : i32, i32
  }
}

</mosaic_0001>

<llo_original>
// kernel: tpu_custom_call.1
$region0: #{tpu_custom_call.1}
  #allocation0 [shape = 'u32[]', space=smem, size = 0x4, offset = 0x4, fixed_abs, tag = 'smem constant byte address 0x4 - core index']
  #allocation1 [shape = 'u32[72,128]{1,0:T(1,128)}', space=vmem, size = 0x9000, scoped, tag = 'internal scratch']
  %s0 = inlined_call_operand.hbm [shape: f32[16,32], index: 0, kind: input, shape index: {}]
  %s1 = inlined_call_operand.hbm [shape: f32[1,32], index: 1, kind: input, shape index: {}]
  %s2 = inlined_call_operand.hbm [shape: f32[16,32], index: 2, kind: output, shape index: {}]
  %s3 = sld [smem:[#allocation0]]
  $region26: #{tpu_custom_call.1} parent=0
    _
  %s5 = ssub.s32 1, %s3
  %s6 = scalar_select 0, %s5, %s3
  $region1: #{tpu_custom_call.1} parent=0
    #allocation2 [shape = 'u8[8192]{0}', space=vmem, size = 0x2000, scoped, tag = 'input window, operand 0, single buffered']
    #allocation3 [shape = 's32[1]{0}', space=sflag, size = 0x4, scoped, tag = 'scoped memory for tpu_custom_call.1']
    #allocation4 [shape = 's32[1]{0}', space=sflag, size = 0x4, scoped, tag = 'scoped memory for tpu_custom_call.1']
    #allocation5 [shape = 'u8[512]{0}', space=vmem, size = 0x400, scoped, tag = 'input window, operand 1, single buffered']
    #allocation6 [shape = 's32[1]{0}', space=sflag, size = 0x4, scoped, tag = 'scoped memory for tpu_custom_call.1']
    #allocation7 [shape = 'u8[8192]{0}', space=vmem, size = 0x2000, scoped, tag = 'output window, operand 0, single buffered']
    %7 = vsyncpa [#allocation3], 0
    %8 = vsyncpa [#allocation6], 0
    %9 = vsyncpa [#allocation4], 0
    // Predicated region
    $region2: #{tpu_custom_call.1} parent=1 // pred_check
      _
    $region3: #{tpu_custom_call.1} parent=1 // pred_check_branch
      %11 = sbr.rel (0) target = $region5
    $region4: #{tpu_custom_call.1} parent=1 // pred_region
      %13 = vsyncadd [#allocation3], 0
      %s14 = sshll.u32 %s0, 4
      %s15 = int_to_ptr.hbm [resolvable:$true] %s14
      %s16 = sshll.u32 [#allocation2], 4
      %s17 = int_to_ptr.vmem [resolvable:$true] %s16
      %22 = dma.hbm_to_vmem [thread:$0]  %s15, 256, %s17, [#allocation3], 128, 128, 8
    $region5: #{tpu_custom_call.1} parent=1 // pred_fallthru
      _
    // Predicated region
    $region6: #{tpu_custom_call.1} parent=1 // pred_check
      _
    $region7: #{tpu_custom_call.1} parent=1 // pred_check_branch
      %24 = sbr.rel (0) target = $region9
    $region8: #{tpu_custom_call.1} parent=1 // pred_region
      %26 = vsyncadd [#allocation6], 0
      %s28 = sshll.u32 %s1, 4
      %s29 = int_to_ptr.hbm [resolvable:$true] %s28
      %s30 = sshll.u32 [#allocation5], 4
      %s31 = int_to_ptr.vmem [resolvable:$true] %s30
      %33 = dma.hbm_to_vmem [thread:$0]  %s29, 16, %s31, [#allocation6]
    $region9: #{tpu_custom_call.1} parent=1 // pred_fallthru
      _
    // Predicated region
    $region10: #{tpu_custom_call.1} parent=1 // pred_check
      _
    $region11: #{tpu_custom_call.1} parent=1 // pred_check_branch
      %35 = sbr.rel (0) target = $region13
    $region12: #{tpu_custom_call.1} parent=1 // pred_region
      %37 = dma.done [#allocation3], 256
    $region13: #{tpu_custom_call.1} parent=1 // pred_fallthru
      _
    // Predicated region
    $region14: #{tpu_custom_call.1} parent=1 // pred_check
      _
    $region15: #{tpu_custom_call.1} parent=1 // pred_check_branch
      %39 = sbr.rel (0) target = $region17
    $region16: #{tpu_custom_call.1} parent=1 // pred_region
      %41 = dma.done [#allocation6], 16
    $region17: #{tpu_custom_call.1} parent=1 // pred_fallthru
      _
    %v42 = vld [vmem:[#allocation2] sm:$0xff]
    %v43 = vld [vmem:[#allocation2 + $0x8] sm:$0xff]
    %v44 = vld [vmem:[#allocation5] sm:$0x1]
    %v45 = vmul.f32 %v42, %v42
    %v46 = vmul.f32 %v43, %v43
    %vm47 = vcmask 261120
    %v48 = vsel %vm47, %v45, 0.0
    %49 = vadd.xlane.f32.xlu0 %v48
    %v50 = vpop.xlane.xlu0 %49
    %v51 = vsel %vm47, %v46, 0.0
    %52 = vadd.xlane.f32.xlu0 %v51
    %v53 = vpop.xlane.xlu0 %52
    %v54 = vrcp.pop 32.0
    %v55 = vmul.f32 32.0, %v54
    %v56 = vsub.f32 1.0, %v55
    %v57 = vmul.f32 %v54, %v56
    %v58 = vadd.f32 %v54, %v57
    %vm59 = vweird.f32 %v54
    %v60 = vsel %vm59, %v54, %v58
    %v61 = vmul.f32 %v50, %v60
    %v62 = vmul.f32 %v53, %v60
    %v63 = vrsqrt.pop %v61
    %v64 = vmul.f32 %v63, %v61
    %v65 = vmul.f32 %v64, %v63
    %v66 = vmul.f32 0.5, %v65
    %v67 = vsub.f32 1.5, %v66
    %v68 = vmul.f32 %v63, %v67
    %v69 = vmul.f32 %v61, %v68
    %vm70 = vcmp.eq.f32.partialorder %v61, inf
    %v71 = vsel %vm70, %v61, %v69
    %vm72 = vcmp.eq.f32.partialorder %v61, 0.0
    %v73 = vand.u32 %v61, 2147483648
    %v74 = vsel %vm72, %v73, %v71
    %v75 = vrsqrt.pop %v62
    %v76 = vmul.f32 %v75, %v62
    %v77 = vmul.f32 %v76, %v75
    %v78 = vmul.f32 0.5, %v77
    %v79 = vsub.f32 1.5, %v78
    %v80 = vmul.f32 %v75, %v79
    %v81 = vmul.f32 %v62, %v80
    %vm82 = vcmp.eq.f32.partialorder %v62, inf
    %v83 = vsel %vm82, %v62, %v81
    %vm84 = vcmp.eq.f32.partialorder %v62, 0.0
    %v85 = vand.u32 %v62, 2147483648
    %v86 = vsel %vm84, %v85, %v83
    %v87 = vadd.f32 %v74, 1e-06
    %v88 = vadd.f32 %v86, 1e-06
    %v89 = vrcp.pop %v87
    %v90 = vmul.f32 %v87, %v89
    %v91 = vsub.f32 1.0, %v90
    %v92 = vmul.f32 %v89, %v91
    %v93 = vadd.f32 %v89, %v92
    %vm94 = vweird.f32 %v87
    %vm95 = vweird.f32 %v89
    %vm96 = vmor %vm94, %vm95
    %v97 = vsel %vm96, %v89, %v93
    %v98 = vand.u32 2147483647, %v87
    %vm99 = vcmp.eq.f32.partialorder %v98, 8.507059e+37
    %v100 = vand.u32 %v87, 2147483648
    %v101 = vor.u32 1.1754944e-38, %v100
    %v102 = vsel %vm99, %v101, %v97
    %v103 = vrcp.pop %v88
    %v104 = vmul.f32 %v88, %v103
    %v105 = vsub.f32 1.0, %v104
    %v106 = vmul.f32 %v103, %v105
    %v107 = vadd.f32 %v103, %v106
    %vm108 = vweird.f32 %v88
    %vm109 = vweird.f32 %v103
    %vm110 = vmor %vm108, %vm109
    %v111 = vsel %vm110, %v103, %v107
    %v112 = vand.u32 2147483647, %v88
    %vm113 = vcmp.eq.f32.partialorder %v112, 8.507059e+37
    %v114 = vand.u32 %v88, 2147483648
    %v115 = vor.u32 1.1754944e-38, %v114
    %v116 = vsel %vm113, %v115, %v111
    %v117 = vmul.f32 %v42, %v102
    %v118 = vmul.f32 %v43, %v116
    %v120 = vperm.slane %v44, 0
    %v122 = vmul.f32 %v117, %v120
    %v123 = vmul.f32 %v118, %v120
    %124 = vst.msk [vmem:[#allocation7] sm:$0xff] %vm47, %v122
    %125 = vst.msk [vmem:[#allocation7 + $0x8] sm:$0xff] %vm47, %v123
    // Predicated region
    $region18: #{tpu_custom_call.1} parent=1 // pred_check
      _
    $region19: #{tpu_custom_call.1} parent=1 // pred_check_branch
      %127 = sbr.rel (0) target = $region21
    $region20: #{tpu_custom_call.1} parent=1 // pred_region
      %129 = vsyncadd [#allocation4], 0
      %s130 = sshll.u32 [#allocation7], 4
      %s131 = int_to_ptr.vmem [resolvable:$true] %s130
      %s132 = sshll.u32 %s2, 4
      %s133 = int_to_ptr.hbm [resolvable:$true] %s132
      %138 = dma.vmem_to_hbm [thread:$0]  %s131, 256, %s133, [#allocation4], 128, 128, 8
    $region21: #{tpu_custom_call.1} parent=1 // pred_fallthru
      _
    // Predicated region
    $region22: #{tpu_custom_call.1} parent=1 // pred_check
      _
    $region23: #{tpu_custom_call.1} parent=1 // pred_check_branch
      %140 = sbr.rel (0) target = $region25
    $region24: #{tpu_custom_call.1} parent=1 // pred_region
      %142 = dma.done [#allocation4], 256
    $region25: #{tpu_custom_call.1} parent=1 // pred_fallthru
      _
    %143 = vsyncpa [#allocation3], 1
    %144 = vsyncpa [#allocation6], 1
    %145 = vsyncpa [#allocation4], 1

</llo_original>
